<compile_context>
chip_gen: v6e
topology: v6e:2x2x1
jax: 0.10.0
libtpu: 0.0.40
codegen_flags: <defaults>
</compile_context>

<pallas_src>
import functools

import jax
import jax.numpy as jnp
import numpy as np
from jax.experimental import pallas as pl
from jax.experimental.pallas import tpu as pltpu


LANE = 128          # pad output (N) axis to lane width -> unmasked stores
BATCH_TILE = 512    # large batch tiles: ~85% of HBM roofline vs ~29% at 128


def _rcml_kernel(x_ref, c_ref, w_in_ref, w_ctx_ref, b_ref, o_ref):
    # x: (B, I)  c: (B, C)  w_in: (I, O_pad)  w_ctx: (C, O_pad)  b: (1, O_pad)
    # Two MXU matmuls into an f32 accumulator + f32 bias-add epilogue.
    wdt = w_in_ref.dtype
    y = jnp.dot(x_ref[...].astype(wdt), w_in_ref[...],
                preferred_element_type=jnp.float32)
    y = y + jnp.dot(c_ref[...].astype(wdt), w_ctx_ref[...],
                    preferred_element_type=jnp.float32)
    o_ref[...] = (y + b_ref[...]).astype(o_ref.dtype)


def fuse_weights(weight, mask, cond_weight, bias, *, dtype=jnp.float32):
    """Build cached effective parameters. Do this ONCE per parameter update.

    - Residual folded into the masked linear: mask*(W+1).
    - Pre-transposed so the kernel never runs an XLU transpose.
    - Kept as TWO arrays (input path / context path) so the forward pass never
      concatenates activations (no extra HBM round-trip).
    - Output axis padded to a multiple of 128 so kernel stores are lane-dense.
    - `dtype=jnp.bfloat16` halves weight VMEM/DMA and MXU passes on v6e/v7x
      (accumulation stays f32 in-kernel); loosen tolerances if you enable it.
    """
    out_features = weight.shape[0]
    o_pad = ((out_features + LANE - 1) // LANE) * LANE
    pad = o_pad - out_features

    w_in_eff = (mask * (weight + 1.0)).T          # (I, O)
    w_ctx_eff = cond_weight.T                     # (C, O)
    bias_eff = bias                               # (O,)
    if pad:
        w_in_eff = jnp.pad(w_in_eff, ((0, 0), (0, pad)))
        w_ctx_eff = jnp.pad(w_ctx_eff, ((0, 0), (0, pad)))
        bias_eff = jnp.pad(bias_eff, (0, pad))

    return (w_in_eff.astype(dtype),
            w_ctx_eff.astype(dtype),
            bias_eff.reshape(1, o_pad).astype(jnp.float32),  # f32 epilogue
            out_features)


@functools.partial(jax.jit, static_argnames=("out_features",))
def residual_conditional_masked_linear(x, context, w_in_eff, w_ctx_eff,
                                       bias2d, out_features):
    """Fused forward: two MXU dots + bias, no concat, lane-dense output."""
    B, I = x.shape
    C = context.shape[1]
    o_pad = w_in_eff.shape[1]
    out_dtype = x.dtype

    if B <= BATCH_TILE:
        # Grid-less: whole problem in one VMEM block, no pipeline bookkeeping.
        out_padded = pl.pallas_call(
            _rcml_kernel,
            out_shape=jax.ShapeDtypeStruct((B, o_pad), out_dtype),
            in_specs=[pl.BlockSpec(memory_space=pltpu.MemorySpace.VMEM)] * 5,
            out_specs=pl.BlockSpec(memory_space=pltpu.MemorySpace.VMEM),
        )(x, context, w_in_eff, w_ctx_eff, bias2d)
    else:
        # Batch-only grid; weights/bias stay VMEM-resident across batch tiles
        # (index_map always (0, 0)), only activations/outputs stream.
        tb = BATCH_TILE
        grid = (pl.cdiv(B, tb),)
        out_padded = pl.pallas_call(
            _rcml_kernel,
            out_shape=jax.ShapeDtypeStruct((B, o_pad), out_dtype),
            grid_spec=pltpu.PrefetchScalarGridSpec(
                num_scalar_prefetch=0,
                grid=grid,
                in_specs=[
                    pl.BlockSpec((tb, I), lambda i: (i, 0)),
                    pl.BlockSpec((tb, C), lambda i: (i, 0)),
                    pl.BlockSpec((I, o_pad), lambda i: (0, 0)),
                    pl.BlockSpec((C, o_pad), lambda i: (0, 0)),
                    pl.BlockSpec((1, o_pad), lambda i: (0, 0)),
                ],
                out_specs=pl.BlockSpec((tb, o_pad), lambda i: (i, 0)),
            ),
            compiler_params=pltpu.CompilerParams(
                dimension_semantics=("parallel",)),  # shard tiles across TCs
        )(x, context, w_in_eff, w_ctx_eff, bias2d)

    if o_pad != out_features:
        out_padded = out_padded[:, :out_features]
    return out_padded


def init_params(key, in_features, out_features, context_features, mask):
    """Deterministic init mirroring MaskedLinear.reset_parameters()."""
    k_w, k_wc = jax.random.split(key, 2)

    # bias = 0
    bias = jnp.zeros((out_features,), jnp.float32)

    # gain('relu') = sqrt(2); std = gain / sqrt(mask.sum(axis=1)); inf -> 1
    gain = float(np.sqrt(2.0))
    n_l = jnp.sum(mask, axis=1)                        # (O,)
    std = gain / jnp.sqrt(n_l)
    std = jnp.where(jnp.isinf(std), 1.0, std)          # rows with empty mask
    weight = jax.random.normal(k_w, (out_features, in_features), jnp.float32)
    weight = weight * std[:, None]

    # cond_linear: nn.Linear default (kaiming uniform); deterministic uniform
    bound = 1.0 / float(np.sqrt(context_features))
    cond_weight = jax.random.uniform(
        k_wc, (out_features, context_features), jnp.float32,
        minval=-bound, maxval=bound)

    return weight, bias, cond_weight


if __name__ == "__main__":
    # Small shapes consistent with the module's Linear semantics.
    B, I, O, C = 8, 32, 32, 16

    key = jax.random.PRNGKey(0)
    k_mask, k_x, k_ctx, k_params = jax.random.split(key, 4)

    # Autoregressive-style binary mask (O, I); row 0 is all zeros, which
    # exercises the inf->1 std branch in init.
    deg_in = jnp.arange(I) % I
    deg_out = jnp.arange(O) % I
    mask = (deg_out[:, None] > deg_in[None, :]).astype(jnp.float32)

    weight, bias, cond_weight = init_params(k_params, I, O, C, mask)

    # Cached effective parameters: residual-fused, pre-transposed, O padded to
    # 128 lanes, split into input/context paths (no activation concat).
    w_in_eff, w_ctx_eff, bias2d, out_features = fuse_weights(
        weight, mask, cond_weight, bias, dtype=jnp.float32)

    def reference(xv, cv):
        return (xv @ (mask * weight).T + bias[None, :]
                + cv @ cond_weight.T
                + xv @ mask.T)

    # --- small batch: grid-less single-block path ---
    x = jax.random.normal(k_x, (B, I), jnp.float32)
    context = jax.random.normal(k_ctx, (B, C), jnp.float32)
    out = jax.block_until_ready(residual_conditional_masked_linear(
        x, context, w_in_eff, w_ctx_eff, bias2d, out_features))
    np.testing.assert_allclose(np.asarray(out), np.asarray(reference(x, context)),
                               rtol=1e-5, atol=1e-5)

    # --- larger batch: 1-D batch grid, resident weights, "parallel" tiles ---
    B_big = 1024
    k_xb, k_cb = jax.random.split(jax.random.PRNGKey(1), 2)
    x_big = jax.random.normal(k_xb, (B_big, I), jnp.float32)
    ctx_big = jax.random.normal(k_cb, (B_big, C), jnp.float32)
    out_big = jax.block_until_ready(residual_conditional_masked_linear(
        x_big, ctx_big, w_in_eff, w_ctx_eff, bias2d, out_features))
    np.testing.assert_allclose(np.asarray(out_big),
                               np.asarray(reference(x_big, ctx_big)),
                               rtol=1e-5, atol=1e-5)

    print("KERNEL_OK")
</pallas_src>

<mosaic_0001>
module attributes {stable_mosaic.version = 11 : i64} {
  func.func @_rcml_kernel(%arg0: memref<8x32xf32, #tpu.memory_space<vmem>>, %arg1: memref<8x16xf32, #tpu.memory_space<vmem>>, %arg2: memref<32x128xf32, #tpu.memory_space<vmem>>, %arg3: memref<16x128xf32, #tpu.memory_space<vmem>>, %arg4: memref<1x128xf32, #tpu.memory_space<vmem>>, %arg5: memref<8x128xf32, #tpu.memory_space<vmem>>) attributes {dimension_semantics = [], scalar_prefetch = 0 : i64, scratch_operands = 0 : i64, tpu.core_type = #tpu.core_type<tc>} {
    %c0 = arith.constant 0 : index
    %c0_0 = arith.constant 0 : index
    %0 = vector.load %arg0[%c0, %c0_0] : memref<8x32xf32, #tpu.memory_space<vmem>>, vector<8x32xf32>
    %c0_1 = arith.constant 0 : index
    %c0_2 = arith.constant 0 : index
    %1 = vector.load %arg2[%c0_1, %c0_2] : memref<32x128xf32, #tpu.memory_space<vmem>>, vector<32x128xf32>
    %cst = arith.constant dense<0.000000e+00> : vector<8x128xf32>
    %2 = tpu.matmul %0, %1, %cst {dimension_numbers = #tpu.dot_dimension_numbers<[1], [0], [0], [1], [0, 0, 1, 1], [], []>} : vector<8x32xf32>, vector<32x128xf32>, vector<8x128xf32> -> vector<8x128xf32>
    %c0_3 = arith.constant 0 : index
    %c0_4 = arith.constant 0 : index
    %3 = vector.load %arg1[%c0_3, %c0_4] : memref<8x16xf32, #tpu.memory_space<vmem>>, vector<8x16xf32>
    %c0_5 = arith.constant 0 : index
    %c0_6 = arith.constant 0 : index
    %4 = vector.load %arg3[%c0_5, %c0_6] : memref<16x128xf32, #tpu.memory_space<vmem>>, vector<16x128xf32>
    %cst_7 = arith.constant dense<0.000000e+00> : vector<8x128xf32>
    %5 = tpu.matmul %3, %4, %cst_7 {dimension_numbers = #tpu.dot_dimension_numbers<[1], [0], [0], [1], [0, 0, 1, 1], [], []>} : vector<8x16xf32>, vector<16x128xf32>, vector<8x128xf32> -> vector<8x128xf32>
    %6 = arith.addf %2, %5 : vector<8x128xf32>
    %c0_8 = arith.constant 0 : index
    %c0_9 = arith.constant 0 : index
    %7 = vector.load %arg4[%c0_8, %c0_9] : memref<1x128xf32, #tpu.memory_space<vmem>>, vector<1x128xf32>
    %8 = vector.broadcast %7 : vector<1x128xf32> to vector<8x128xf32>
    %9 = arith.addf %6, %8 : vector<8x128xf32>
    %c0_10 = arith.constant 0 : index
    %c0_11 = arith.constant 0 : index
    %10 = vector.load %arg5[%c0_10, %c0_11] : memref<8x128xf32, #tpu.memory_space<vmem>>, vector<8x128xf32>
    tpu.vector_store %arg5[%c0_10, %c0_11], %9 {strides = array<i32>} : memref<8x128xf32, #tpu.memory_space<vmem>>, vector<8x128xf32>,
    return
  }
}

</mosaic_0001>

<llo_original>
// kernel: residual_conditional_masked_linear.1
$region0: #{residual_conditional_masked_linear.1}
  #allocation0 [shape = 'u32[]', space=smem, size = 0x4, offset = 0x4, fixed_abs, tag = 'smem constant byte address 0x4 - core index']
  #allocation1 [shape = 'u32[144,128]{1,0:T(1,128)}', space=vmem, size = 0x12000, scoped, tag = 'internal scratch']
  %s0 = inlined_call_operand.hbm [shape: f32[8,32], index: 0, kind: input, shape index: {}]
  %s1 = inlined_call_operand.hbm [shape: f32[8,16], index: 1, kind: input, shape index: {}]
  %s2 = inlined_call_operand.hbm [shape: f32[32,128], index: 2, kind: input, shape index: {}]
  %s3 = inlined_call_operand.hbm [shape: f32[16,128], index: 3, kind: input, shape index: {}]
  %s4 = inlined_call_operand.vmem [shape: f32[1,128], index: 4, kind: input, shape index: {}]
  %s5 = inlined_call_operand.hbm [shape: f32[8,128], index: 5, kind: output, shape index: {}]
  %s6 = sld [smem:[#allocation0]]
  $region46: #{residual_conditional_masked_linear.1} parent=0
    _
  %s8 = ssub.s32 1, %s6
  %s9 = scalar_select 0, %s8, %s6
  $region1: #{residual_conditional_masked_linear.1} parent=0
    #allocation2 [shape = 'u8[4096]{0}', space=vmem, size = 0x1000, scoped, tag = 'input window, operand 0, single buffered']
    #allocation3 [shape = 's32[1]{0}', space=sflag, size = 0x4, scoped, tag = 'scoped memory for residual_conditional_masked_linear.1']
    #allocation4 [shape = 's32[1]{0}', space=sflag, size = 0x4, scoped, tag = 'scoped memory for residual_conditional_masked_linear.1']
    #allocation5 [shape = 'u8[4096]{0}', space=vmem, size = 0x1000, scoped, tag = 'input window, operand 1, single buffered']
    #allocation6 [shape = 's32[1]{0}', space=sflag, size = 0x4, scoped, tag = 'scoped memory for residual_conditional_masked_linear.1']
    #allocation7 [shape = 'u8[16384]{0}', space=vmem, size = 0x4000, scoped, tag = 'input window, operand 2, single buffered']
    #allocation8 [shape = 'u8[8192]{0}', space=vmem, size = 0x2000, scoped, tag = 'input window, operand 3, single buffered']
    #allocation9 [shape = 's32[1]{0}', space=sflag, size = 0x4, scoped, tag = 'scoped memory for residual_conditional_masked_linear.1']
    #allocation10 [shape = 'u8[4096]{0}', space=vmem, size = 0x1000, scoped, tag = 'output window, operand 0, single buffered']
    %10 = vsyncpa [#allocation3], 0
    %11 = vsyncpa [#allocation6], 0
    %12 = vsyncpa [#allocation9], 0
    %13 = vsyncpa [#allocation4], 0
    // Predicated region
    $region2: #{residual_conditional_masked_linear.1} parent=1 // pred_check
      _
    $region3: #{residual_conditional_masked_linear.1} parent=1 // pred_check_branch
      %15 = sbr.rel (0) target = $region5
    $region4: #{residual_conditional_masked_linear.1} parent=1 // pred_region
      %s17 = ssub.s32 128, 128
      %18 = vsyncadd [#allocation3], %s17
      %s20 = sshll.u32 [#allocation2], 4
      %s21 = int_to_ptr.vmem [resolvable:$true] %s20
      %23 = dma.hbm_to_vmem [thread:$0]  %s0, 128, %s21, [#allocation3]
    $region5: #{residual_conditional_masked_linear.1} parent=1 // pred_fallthru
      _
    // Predicated region
    $region6: #{residual_conditional_masked_linear.1} parent=1 // pred_check
      _
    $region7: #{residual_conditional_masked_linear.1} parent=1 // pred_check_branch
      %25 = sbr.rel (0) target = $region9
    $region8: #{residual_conditional_masked_linear.1} parent=1 // pred_region
      %s27 = ssub.s32 128, 128
      %28 = vsyncadd [#allocation6], %s27
      %s30 = sshll.u32 [#allocation5], 4
      %s31 = int_to_ptr.vmem [resolvable:$true] %s30
      %33 = dma.hbm_to_vmem [thread:$0]  %s1, 128, %s31, [#allocation6]
    $region9: #{residual_conditional_masked_linear.1} parent=1 // pred_fallthru
      _
    // Predicated region
    $region10: #{residual_conditional_masked_linear.1} parent=1 // pred_check
      _
    $region11: #{residual_conditional_masked_linear.1} parent=1 // pred_check_branch
      %35 = sbr.rel (0) target = $region13
    $region12: #{residual_conditional_masked_linear.1} parent=1 // pred_region
      %s37 = ssub.s32 512, 512
      %38 = vsyncadd [#allocation6], %s37
      %s39 = sshll.u32 [#allocation7], 4
      %s40 = int_to_ptr.vmem [resolvable:$true] %s39
      %45 = dma.hbm_to_vmem [thread:$0]  %s2, 512, %s40, [#allocation6], 128, 128, 8
    $region13: #{residual_conditional_masked_linear.1} parent=1 // pred_fallthru
      _
    // Predicated region
    $region14: #{residual_conditional_masked_linear.1} parent=1 // pred_check
      _
    $region15: #{residual_conditional_masked_linear.1} parent=1 // pred_check_branch
      %47 = sbr.rel (0) target = $region17
    $region16: #{residual_conditional_masked_linear.1} parent=1 // pred_region
      %s49 = ssub.s32 256, 256
      %50 = vsyncadd [#allocation9], %s49
      %s51 = sshll.u32 [#allocation8], 4
      %s52 = int_to_ptr.vmem [resolvable:$true] %s51
      %57 = dma.hbm_to_vmem [thread:$0]  %s3, 256, %s52, [#allocation9], 128, 128, 8
    $region17: #{residual_conditional_masked_linear.1} parent=1 // pred_fallthru
      _
    // Predicated region
    $region18: #{residual_conditional_masked_linear.1} parent=1 // pred_check
      _
    $region19: #{residual_conditional_masked_linear.1} parent=1 // pred_check_branch
      %59 = sbr.rel (0) target = $region21
    $region20: #{residual_conditional_masked_linear.1} parent=1 // pred_region
      _
    $region21: #{residual_conditional_masked_linear.1} parent=1 // pred_fallthru
      _
    // Predicated region
    $region22: #{residual_conditional_masked_linear.1} parent=1 // pred_check
      _
    $region23: #{residual_conditional_masked_linear.1} parent=1 // pred_check_branch
      %61 = sbr.rel (0) target = $region25
    $region24: #{residual_conditional_masked_linear.1} parent=1 // pred_region
      %62 = dma.done [#allocation3], 128
    $region25: #{residual_conditional_masked_linear.1} parent=1 // pred_fallthru
      _
    // Predicated region
    $region26: #{residual_conditional_masked_linear.1} parent=1 // pred_check
      _
    $region27: #{residual_conditional_masked_linear.1} parent=1 // pred_check_branch
      %64 = sbr.rel (0) target = $region29
    $region28: #{residual_conditional_masked_linear.1} parent=1 // pred_region
      %65 = dma.done [#allocation6], 128
    $region29: #{residual_conditional_masked_linear.1} parent=1 // pred_fallthru
      _
    // Predicated region
    $region30: #{residual_conditional_masked_linear.1} parent=1 // pred_check
      _
    $region31: #{residual_conditional_masked_linear.1} parent=1 // pred_check_branch
      %67 = sbr.rel (0) target = $region33
    $region32: #{residual_conditional_masked_linear.1} parent=1 // pred_region
      %68 = dma.done [#allocation6], 512
    $region33: #{residual_conditional_masked_linear.1} parent=1 // pred_fallthru
      _
    // Predicated region
    $region34: #{residual_conditional_masked_linear.1} parent=1 // pred_check
      _
    $region35: #{residual_conditional_masked_linear.1} parent=1 // pred_check_branch
      %70 = sbr.rel (0) target = $region37
    $region36: #{residual_conditional_masked_linear.1} parent=1 // pred_region
      %71 = dma.done [#allocation9], 256
    $region37: #{residual_conditional_masked_linear.1} parent=1 // pred_fallthru
      _
    %v72 = vld [vmem:[#allocation2] sm:$0xff]
    %v73 = vld [vmem:[#allocation7] sm:$0xff]
    %v74 = vld [vmem:[#allocation7 + $0x8] sm:$0xff]
    %v75 = vld [vmem:[#allocation7 + $0x10] sm:$0xff]
    %v76 = vld [vmem:[#allocation7 + $0x18] sm:$0xff]
    %v77 = vld [vmem:[#allocation5] sm:$0xff]
    %v78 = vld [vmem:[#allocation8] sm:$0xff]
    %v79 = vld [vmem:[#allocation8 + $0x8] sm:$0xff]
    %vm80 = vcmask 130048
    %v82 = vsel %vm80, %v77, 0
    %84 = vmatprep.subr.mxu0 0.0
    %85 = vmatpush1.msra.mxu0 0.0
    %86 = vmatprep.subr.mxu0 0.0
    %87 = vmatpush1.msra.mxu0 0.0
    %88 = vmatprep.subr.mxu0 0.0
    %89 = vmatpush1.msra.mxu0 0.0
    %90 = vmatprep.subr.mxu0 0.0
    %91 = vmatpush1.msra.mxu0 0.0
    %92 = vmatprep.subr.mxu0 0.0
    %93 = vmatpush1.msra.mxu0 0.0
    %94 = vmatprep.subr.mxu0 0.0
    %95 = vmatpush1.msra.mxu0 0.0
    %96 = vmatprep.subr.mxu0 0.0
    %97 = vmatpush1.msra.mxu0 0.0
    %98 = vmatprep.subr.mxu0 0.0
    %99 = vmatpush1.msra.mxu0 0.0
    %100 = vmatprep.subr.mxu0 0.0
    %101 = vmatpush1.msra.mxu0 0.0
    %102 = vmatprep.subr.mxu0 0.0
    %103 = vmatpush1.msra.mxu0 0.0
    %104 = vmatprep.subr.mxu0 0.0
    %105 = vmatpush1.msra.mxu0 0.0
    %106 = vmatprep.subr.mxu0 0.0
    %107 = vmatpush1.msra.mxu0 0.0
    %108 = vmatprep.subr.mxu0 0.0
    %109 = vmatpush1.msra.mxu0 0.0
    %110 = vmatprep.subr.mxu0 0.0
    %111 = vmatpush1.msra.mxu0 0.0
    %112 = vmatprep.subr.mxu0 0.0
    %113 = vmatpush1.msra.mxu0 %v79
    %114 = vmatprep.subr.mxu0 0.0
    %115 = vmatpush1.msra.mxu0 %v78
    %116 = vmatprep.subr.mxu0 0.0
    %117 = vmatpush2.msra.mxu0 0.0
    %118 = vmatprep.subr.mxu0 0.0
    %119 = vmatpush2.msra.mxu0 0.0
    %120 = vmatprep.subr.mxu0 0.0
    %121 = vmatpush2.msra.mxu0 0.0
    %122 = vmatprep.subr.mxu0 0.0
    %123 = vmatpush2.msra.mxu0 0.0
    %124 = vmatprep.subr.mxu0 0.0
    %125 = vmatpush2.msra.mxu0 0.0
    %126 = vmatprep.subr.mxu0 0.0
    %127 = vmatpush2.msra.mxu0 0.0
    %128 = vmatprep.subr.mxu0 0.0
    %129 = vmatpush2.msra.mxu0 0.0
    %130 = vmatprep.subr.mxu0 0.0
    %131 = vmatpush2.msra.mxu0 0.0
    %132 = vmatprep.subr.mxu0 0.0
    %133 = vmatpush2.msra.mxu0 0.0
    %134 = vmatprep.subr.mxu0 0.0
    %135 = vmatpush2.msra.mxu0 0.0
    %136 = vmatprep.subr.mxu0 0.0
    %137 = vmatpush2.msra.mxu0 0.0
    %138 = vmatprep.subr.mxu0 0.0
    %139 = vmatpush2.msra.mxu0 0.0
    %140 = vmatprep.subr.mxu0 0.0
    %141 = vmatpush2.msra.mxu0 0.0
    %142 = vmatprep.subr.mxu0 0.0
    %143 = vmatpush2.msra.mxu0 0.0
    %144 = vmatprep.subr.mxu0 0.0
    %145 = vmatpush2.msra.mxu0 0.0
    %146 = vmatprep.subr.mxu0 0.0
    %147 = vmatpush2.msra.mxu0 0.0
    %148 = vmatprep.mubr.f32.mxu0 0.0
    %149 = vmatmul.mubr.f32.gmra.mxu0 %v82
    %v150 = vpop.f32.mrf.mxu0
    %v151 = vadd.f32 0.0, %v150
    %v152 = vpop.f32.mrf.mxu0
    %153 = vdwg.mxu0
    %vm154 = vcmask 261120
    %v156 = vsel %vm154, %v72, 0
    %158 = vmatprep.subr.mxu0 0.0
    %159 = vmatpush1.msra.mxu0 0.0
    %160 = vmatprep.subr.mxu0 0.0
    %161 = vmatpush1.msra.mxu0 0.0
    %162 = vmatprep.subr.mxu0 0.0
    %163 = vmatpush1.msra.mxu0 0.0
    %164 = vmatprep.subr.mxu0 0.0
    %165 = vmatpush1.msra.mxu0 0.0
    %166 = vmatprep.subr.mxu0 0.0
    %167 = vmatpush1.msra.mxu0 0.0
    %168 = vmatprep.subr.mxu0 0.0
    %169 = vmatpush1.msra.mxu0 0.0
    %170 = vmatprep.subr.mxu0 0.0
    %171 = vmatpush1.msra.mxu0 0.0
    %172 = vmatprep.subr.mxu0 0.0
    %173 = vmatpush1.msra.mxu0 0.0
    %174 = vmatprep.subr.mxu0 0.0
    %175 = vmatpush1.msra.mxu0 0.0
    %176 = vmatprep.subr.mxu0 0.0
    %177 = vmatpush1.msra.mxu0 0.0
    %178 = vmatprep.subr.mxu0 0.0
    %179 = vmatpush1.msra.mxu0 0.0
    %180 = vmatprep.subr.mxu0 0.0
    %181 = vmatpush1.msra.mxu0 0.0
    %182 = vmatprep.subr.mxu0 0.0
    %183 = vmatpush1.msra.mxu0 %v76
    %184 = vmatprep.subr.mxu0 0.0
    %185 = vmatpush1.msra.mxu0 %v75
    %186 = vmatprep.subr.mxu0 0.0
    %187 = vmatpush1.msra.mxu0 %v74
    %188 = vmatprep.subr.mxu0 0.0
    %189 = vmatpush1.msra.mxu0 %v73
    %190 = vmatprep.subr.mxu0 0.0
    %191 = vmatpush2.msra.mxu0 0.0
    %192 = vmatprep.subr.mxu0 0.0
    %193 = vmatpush2.msra.mxu0 0.0
    %194 = vmatprep.subr.mxu0 0.0
    %195 = vmatpush2.msra.mxu0 0.0
    %196 = vmatprep.subr.mxu0 0.0
    %197 = vmatpush2.msra.mxu0 0.0
    %198 = vmatprep.subr.mxu0 0.0
    %199 = vmatpush2.msra.mxu0 0.0
    %200 = vmatprep.subr.mxu0 0.0
    %201 = vmatpush2.msra.mxu0 0.0
    %202 = vmatprep.subr.mxu0 0.0
    %203 = vmatpush2.msra.mxu0 0.0
    %204 = vmatprep.subr.mxu0 0.0
    %205 = vmatpush2.msra.mxu0 0.0
    %206 = vmatprep.subr.mxu0 0.0
    %207 = vmatpush2.msra.mxu0 0.0
    %208 = vmatprep.subr.mxu0 0.0
    %209 = vmatpush2.msra.mxu0 0.0
    %210 = vmatprep.subr.mxu0 0.0
    %211 = vmatpush2.msra.mxu0 0.0
    %212 = vmatprep.subr.mxu0 0.0
    %213 = vmatpush2.msra.mxu0 0.0
    %214 = vmatprep.subr.mxu0 0.0
    %215 = vmatpush2.msra.mxu0 0.0
    %216 = vmatprep.subr.mxu0 0.0
    %217 = vmatpush2.msra.mxu0 0.0
    %218 = vmatprep.subr.mxu0 0.0
    %219 = vmatpush2.msra.mxu0 0.0
    %220 = vmatprep.subr.mxu0 0.0
    %221 = vmatpush2.msra.mxu0 0.0
    %222 = vmatprep.mubr.f32.mxu0 0.0
    %223 = vmatmul.mubr.f32.gmra.mxu0 %v156
    %v224 = vpop.f32.mrf.mxu0
    %v225 = vadd.f32 %v151, %v224
    %v226 = vpop.f32.mrf.mxu0
    %227 = vdwg.mxu0
    %v228 = vld [vmem:[%s4] sm:$0x1]
    %v230 = vlaneseq
    %v231 = vshrl.u32 %v230, 7
    %v232 = vsub.s32 0, %v231
    %v233 = vrot.slane %v228, %v232
    %v235 = vadd.f32 %v225, %v233
    %236 = vst [vmem:[#allocation10] sm:$0xff] %v235
    // Predicated region
    $region38: #{residual_conditional_masked_linear.1} parent=1 // pred_check
      _
    $region39: #{residual_conditional_masked_linear.1} parent=1 // pred_check_branch
      %238 = sbr.rel (0) target = $region41
    $region40: #{residual_conditional_masked_linear.1} parent=1 // pred_region
      %s240 = ssub.s32 128, 128
      %241 = vsyncadd [#allocation4], %s240
      %s243 = sshll.u32 [#allocation10], 4
      %s244 = int_to_ptr.vmem [resolvable:$true] %s243
      %246 = dma.vmem_to_hbm [thread:$0]  %s244, 128, %s5, [#allocation4]
    $region41: #{residual_conditional_masked_linear.1} parent=1 // pred_fallthru
      _
    // Predicated region
    $region42: #{residual_conditional_masked_linear.1} parent=1 // pred_check
      _
    $region43: #{residual_conditional_masked_linear.1} parent=1 // pred_check_branch
      %248 = sbr.rel (0) target = $region45
    $region44: #{residual_conditional_masked_linear.1} parent=1 // pred_region
      %249 = dma.done [#allocation4], 128
    $region45: #{residual_conditional_masked_linear.1} parent=1 // pred_fallthru
      _
    %250 = vsyncpa [#allocation3], 1
    %251 = vsyncpa [#allocation6], 1
    %252 = vsyncpa [#allocation9], 1
    %253 = vsyncpa [#allocation4], 1

</llo_original>
